<compile_context>
chip_gen: v6e
topology: v6e:2x2x1
jax: 0.10.0
libtpu: 0.0.40
codegen_flags: <defaults>
</compile_context>

<pallas_src>
import functools

import jax
import jax.numpy as jnp
from jax import lax
from jax.experimental import pallas as pl
from jax.experimental.pallas import tpu as pltpu

# ---- module hyper-params (small synthetic config, shapes consistent with the module) ----
CLIP_EMBED_DIM = 128          # clip_embeddings_dim
CROSS_ATTN_DIM = 128          # cross_attention_dim
NUM_TOKENS = 4                # clip_extra_context_tokens
LN_EPS = 1e-5                 # torch.nn.LayerNorm default


def _round_up(x, m):
    return ((x + m - 1) // m) * m


def _image_proj_kernel(x_ref, w_ref, b_ref, gamma_ref, beta_ref, o_ref,
                       *, num_tokens, cross_dim, eps):
    """Fused linear projection + per-token LayerNorm, lane-dense 2-D output."""
    # Casts are no-ops when inputs are already f32; they keep the kernel correct
    # if activations are ever fed in bf16.
    x = x_ref[...].astype(jnp.float32)                  # (TM, D_in)
    w = w_ref[...].astype(jnp.float32)                  # (D_in, T*C): bf16 in HBM -> f32 in VMEM
    gamma = gamma_ref[...].astype(jnp.float32)          # (1, C)
    beta = beta_ref[...].astype(jnp.float32)            # (1, C)

    # Single wide MXU matmul covering all tokens at once, f32 accumulation.
    y = jnp.dot(x, w, preferred_element_type=jnp.float32)     # (TM, T*C)
    y = y + b_ref[...].astype(jnp.float32)

    # Static unroll over tokens: every slice is a lane-aligned 128-wide column
    # group, so there is no relayout and every store is an unmasked full vst.
    for t in range(num_tokens):
        lo = t * cross_dim
        yt = y[:, lo:lo + cross_dim]                           # (TM, C)
        mean = jnp.mean(yt, axis=-1, keepdims=True)
        cent = yt - mean
        var = jnp.mean(cent * cent, axis=-1, keepdims=True)
        out = cent * lax.rsqrt(var + eps) * gamma + beta       # rsqrt -> EUP
        o_ref[:, lo:lo + cross_dim] = out.astype(o_ref.dtype)


def image_proj_model(image_embeds, w, b, gamma, beta, *, block_m=128):
    """image_embeds: (B, CLIP_EMBED_DIM) -> (B, NUM_TOKENS, CROSS_ATTN_DIM)."""
    B, d_in = image_embeds.shape
    assert d_in == CLIP_EMBED_DIM
    out_dim = NUM_TOKENS * CROSS_ATTN_DIM

    # Carry the (dominant-HBM-traffic) projection weight in bf16; f32 elsewhere.
    w_bf16 = w.astype(jnp.bfloat16)
    b2 = b.reshape(1, out_dim).astype(jnp.float32)
    gamma2 = gamma.reshape(1, CROSS_ATTN_DIM).astype(jnp.float32)
    beta2 = beta.reshape(1, CROSS_ATTN_DIM).astype(jnp.float32)

    # Tile the batch over the grid; pad B up so every block is a full (TM, ...)
    # tile (full 8-sublane stores, no partially-masked last block).
    tm = min(block_m, _round_up(B, 8))
    b_pad = _round_up(B, tm)
    x = image_embeds
    if b_pad != B:
        x = jnp.pad(x, ((0, b_pad - B), (0, 0)))
    grid = (pl.cdiv(b_pad, tm),)

    kernel = functools.partial(
        _image_proj_kernel,
        num_tokens=NUM_TOKENS, cross_dim=CROSS_ATTN_DIM, eps=LN_EPS)

    out2d = pl.pallas_call(
        kernel,
        out_shape=jax.ShapeDtypeStruct((b_pad, out_dim), image_embeds.dtype),
        grid=grid,
        in_specs=[
            pl.BlockSpec((tm, d_in), lambda i: (i, 0)),            # x: tiled over batch
            pl.BlockSpec((d_in, out_dim), lambda i: (0, 0)),       # w: VMEM-resident
            pl.BlockSpec((1, out_dim), lambda i: (0, 0)),          # bias
            pl.BlockSpec((1, CROSS_ATTN_DIM), lambda i: (0, 0)),   # gamma
            pl.BlockSpec((1, CROSS_ATTN_DIM), lambda i: (0, 0)),   # beta
        ],
        out_specs=pl.BlockSpec((tm, out_dim), lambda i: (i, 0)),   # lane-dense 2-D output
        compiler_params=pltpu.CompilerParams(
            dimension_semantics=("parallel",)),
    )(x, w_bf16, b2, gamma2, beta2)

    # Un-pad and reshape to tokens in the wrapper (free layout plumbing).
    return out2d[:B].reshape(B, NUM_TOKENS, CROSS_ATTN_DIM)


def _reference(image_embeds, w, b, gamma, beta):
    # Reference uses the same bf16-rounded weight the kernel stores in HBM so the
    # comparison isolates kernel numerics (f32 matmul/LN in both paths).
    wq = w.astype(jnp.bfloat16).astype(jnp.float32)
    y = image_embeds.astype(jnp.float32) @ wq + b
    y = y.reshape(-1, NUM_TOKENS, CROSS_ATTN_DIM)
    mean = jnp.mean(y, axis=-1, keepdims=True)
    var = jnp.mean((y - mean) ** 2, axis=-1, keepdims=True)
    return (y - mean) / jnp.sqrt(var + LN_EPS) * gamma + beta


if __name__ == "__main__":
    key = jax.random.PRNGKey(0)
    k_x, k_w, k_b = jax.random.split(key, 3)

    B = 2
    x = jax.random.normal(k_x, (B, CLIP_EMBED_DIM), dtype=jnp.float32)

    # Deterministic parameter init (synthetic; mimics nn.Linear / nn.LayerNorm shapes).
    out_dim = NUM_TOKENS * CROSS_ATTN_DIM
    w = jax.random.normal(k_w, (CLIP_EMBED_DIM, out_dim), dtype=jnp.float32) * 0.02
    b = jax.random.normal(k_b, (out_dim,), dtype=jnp.float32) * 0.01
    gamma = jnp.ones((CROSS_ATTN_DIM,), dtype=jnp.float32)
    beta = jnp.zeros((CROSS_ATTN_DIM,), dtype=jnp.float32)

    out = image_proj_model(x, w, b, gamma, beta)
    out = jax.block_until_ready(out)

    ref = _reference(x, w, b, gamma, beta)
    assert out.shape == (B, NUM_TOKENS, CROSS_ATTN_DIM)
    assert jnp.allclose(out, ref, atol=1e-4, rtol=1e-4), "mismatch vs reference"

    print("KERNEL_OK")
</pallas_src>

<mosaic_0001>
module attributes {stable_mosaic.version = 11 : i64} {
  func.func @_image_proj_kernel(%arg0: i32, %arg1: memref<8x128xf32, #tpu.memory_space<vmem>>, %arg2: memref<128x512xbf16, #tpu.memory_space<vmem>>, %arg3: memref<1x512xf32, #tpu.memory_space<vmem>>, %arg4: memref<1x128xf32, #tpu.memory_space<vmem>>, %arg5: memref<1x128xf32, #tpu.memory_space<vmem>>, %arg6: memref<8x512xf32, #tpu.memory_space<vmem>>) attributes {dimension_semantics = [#tpu.dimension_semantics<parallel>], iteration_bounds = array<i64: 1>, scalar_prefetch = 0 : i64, scratch_operands = 0 : i64, tpu.core_type = #tpu.core_type<tc>, window_params = [{transform_indices = @transform_0, window_bounds = array<i64: 8, 128>}, {pipeline_mode = #tpu.pipeline_mode<synchronous>, transform_indices = @transform_1, window_bounds = array<i64: 128, 512>}, {pipeline_mode = #tpu.pipeline_mode<synchronous>, transform_indices = @transform_2, window_bounds = array<i64: 1, 512>}, {pipeline_mode = #tpu.pipeline_mode<synchronous>, transform_indices = @transform_3, window_bounds = array<i64: 1, 128>}, {pipeline_mode = #tpu.pipeline_mode<synchronous>, transform_indices = @transform_4, window_bounds = array<i64: 1, 128>}, {transform_indices = @transform_5, window_bounds = array<i64: 8, 512>}]} {
    %c0 = arith.constant 0 : index
    %c0_0 = arith.constant 0 : index
    %0 = vector.load %arg1[%c0, %c0_0] : memref<8x128xf32, #tpu.memory_space<vmem>>, vector<8x128xf32>
    %c0_1 = arith.constant 0 : index
    %c0_2 = arith.constant 0 : index
    %1 = vector.load %arg2[%c0_1, %c0_2] : memref<128x512xbf16, #tpu.memory_space<vmem>>, vector<128x512xbf16>
    %2 = arith.extf %1 : vector<128x512xbf16> to vector<128x512xf32>
    %c0_3 = arith.constant 0 : index
    %c0_4 = arith.constant 0 : index
    %3 = vector.load %arg4[%c0_3, %c0_4] : memref<1x128xf32, #tpu.memory_space<vmem>>, vector<1x128xf32>
    %c0_5 = arith.constant 0 : index
    %c0_6 = arith.constant 0 : index
    %4 = vector.load %arg5[%c0_5, %c0_6] : memref<1x128xf32, #tpu.memory_space<vmem>>, vector<1x128xf32>
    %cst = arith.constant dense<0.000000e+00> : vector<8x512xf32>
    %5 = tpu.matmul %0, %2, %cst {dimension_numbers = #tpu.dot_dimension_numbers<[1], [0], [0], [1], [0, 0, 1, 1], [], []>} : vector<8x128xf32>, vector<128x512xf32>, vector<8x512xf32> -> vector<8x512xf32>
    %c0_7 = arith.constant 0 : index
    %c0_8 = arith.constant 0 : index
    %6 = vector.load %arg3[%c0_7, %c0_8] : memref<1x512xf32, #tpu.memory_space<vmem>>, vector<1x512xf32>
    %7 = vector.broadcast %6 : vector<1x512xf32> to vector<8x512xf32>
    %8 = arith.addf %5, %7 : vector<8x512xf32>
    %9 = vector.extract_strided_slice %8 {offsets = [0, 0], sizes = [8, 128], strides = [1, 1]} : vector<8x512xf32> to vector<8x128xf32>
    %cst_9 = arith.constant dense<0.000000e+00> : vector<8xf32>
    %10 = vector.multi_reduction <add>, %9, %cst_9 [1] : vector<8x128xf32> to vector<8xf32>
    %11 = vector.shape_cast %10 : vector<8xf32> to vector<8x1xf32>
    %cst_10 = arith.constant 1.280000e+02 : f32
    %12 = vector.broadcast %cst_10 : f32 to vector<8x1xf32>
    %13 = arith.divf %11, %12 : vector<8x1xf32>
    %14 = vector.broadcast %13 : vector<8x1xf32> to vector<8x128xf32>
    %15 = arith.subf %9, %14 : vector<8x128xf32>
    %16 = arith.mulf %15, %15 : vector<8x128xf32>
    %cst_11 = arith.constant dense<0.000000e+00> : vector<8xf32>
    %17 = vector.multi_reduction <add>, %16, %cst_11 [1] : vector<8x128xf32> to vector<8xf32>
    %18 = vector.shape_cast %17 : vector<8xf32> to vector<8x1xf32>
    %cst_12 = arith.constant 1.280000e+02 : f32
    %19 = vector.broadcast %cst_12 : f32 to vector<8x1xf32>
    %20 = arith.divf %18, %19 : vector<8x1xf32>
    %cst_13 = arith.constant 9.99999974E-6 : f32
    %21 = vector.broadcast %cst_13 : f32 to vector<8x1xf32>
    %22 = arith.addf %20, %21 : vector<8x1xf32>
    %23 = math.rsqrt %22 : vector<8x1xf32>
    %24 = vector.broadcast %23 : vector<8x1xf32> to vector<8x128xf32>
    %25 = arith.mulf %15, %24 : vector<8x128xf32>
    %26 = vector.broadcast %3 : vector<1x128xf32> to vector<8x128xf32>
    %27 = arith.mulf %25, %26 : vector<8x128xf32>
    %28 = vector.broadcast %4 : vector<1x128xf32> to vector<8x128xf32>
    %29 = arith.addf %27, %28 : vector<8x128xf32>
    %c0_14 = arith.constant 0 : index
    %c0_15 = arith.constant 0 : index
    %30 = vector.load %arg6[%c0_14, %c0_15] : memref<8x512xf32, #tpu.memory_space<vmem>>, vector<8x128xf32>
    tpu.vector_store %arg6[%c0_14, %c0_15], %29 {strides = array<i32>} : memref<8x512xf32, #tpu.memory_space<vmem>>, vector<8x128xf32>,
    %31 = vector.extract_strided_slice %8 {offsets = [0, 128], sizes = [8, 128], strides = [1, 1]} : vector<8x512xf32> to vector<8x128xf32>
    %cst_16 = arith.constant dense<0.000000e+00> : vector<8xf32>
    %32 = vector.multi_reduction <add>, %31, %cst_16 [1] : vector<8x128xf32> to vector<8xf32>
    %33 = vector.shape_cast %32 : vector<8xf32> to vector<8x1xf32>
    %cst_17 = arith.constant 1.280000e+02 : f32
    %34 = vector.broadcast %cst_17 : f32 to vector<8x1xf32>
    %35 = arith.divf %33, %34 : vector<8x1xf32>
    %36 = vector.broadcast %35 : vector<8x1xf32> to vector<8x128xf32>
    %37 = arith.subf %31, %36 : vector<8x128xf32>
    %38 = arith.mulf %37, %37 : vector<8x128xf32>
    %cst_18 = arith.constant dense<0.000000e+00> : vector<8xf32>
    %39 = vector.multi_reduction <add>, %38, %cst_18 [1] : vector<8x128xf32> to vector<8xf32>
    %40 = vector.shape_cast %39 : vector<8xf32> to vector<8x1xf32>
    %cst_19 = arith.constant 1.280000e+02 : f32
    %41 = vector.broadcast %cst_19 : f32 to vector<8x1xf32>
    %42 = arith.divf %40, %41 : vector<8x1xf32>
    %cst_20 = arith.constant 9.99999974E-6 : f32
    %43 = vector.broadcast %cst_20 : f32 to vector<8x1xf32>
    %44 = arith.addf %42, %43 : vector<8x1xf32>
    %45 = math.rsqrt %44 : vector<8x1xf32>
    %46 = vector.broadcast %45 : vector<8x1xf32> to vector<8x128xf32>
    %47 = arith.mulf %37, %46 : vector<8x128xf32>
    %48 = vector.broadcast %3 : vector<1x128xf32> to vector<8x128xf32>
    %49 = arith.mulf %47, %48 : vector<8x128xf32>
    %50 = vector.broadcast %4 : vector<1x128xf32> to vector<8x128xf32>
    %51 = arith.addf %49, %50 : vector<8x128xf32>
    %c0_21 = arith.constant 0 : index
    %c128 = arith.constant 128 : index
    %52 = vector.load %arg6[%c0_21, %c128] : memref<8x512xf32, #tpu.memory_space<vmem>>, vector<8x128xf32>
    tpu.vector_store %arg6[%c0_21, %c128], %51 {strides = array<i32>} : memref<8x512xf32, #tpu.memory_space<vmem>>, vector<8x128xf32>,
    %53 = vector.extract_strided_slice %8 {offsets = [0, 256], sizes = [8, 128], strides = [1, 1]} : vector<8x512xf32> to vector<8x128xf32>
    %cst_22 = arith.constant dense<0.000000e+00> : vector<8xf32>
    %54 = vector.multi_reduction <add>, %53, %cst_22 [1] : vector<8x128xf32> to vector<8xf32>
    %55 = vector.shape_cast %54 : vector<8xf32> to vector<8x1xf32>
    %cst_23 = arith.constant 1.280000e+02 : f32
    %56 = vector.broadcast %cst_23 : f32 to vector<8x1xf32>
    %57 = arith.divf %55, %56 : vector<8x1xf32>
    %58 = vector.broadcast %57 : vector<8x1xf32> to vector<8x128xf32>
    %59 = arith.subf %53, %58 : vector<8x128xf32>
    %60 = arith.mulf %59, %59 : vector<8x128xf32>
    %cst_24 = arith.constant dense<0.000000e+00> : vector<8xf32>
    %61 = vector.multi_reduction <add>, %60, %cst_24 [1] : vector<8x128xf32> to vector<8xf32>
    %62 = vector.shape_cast %61 : vector<8xf32> to vector<8x1xf32>
    %cst_25 = arith.constant 1.280000e+02 : f32
    %63 = vector.broadcast %cst_25 : f32 to vector<8x1xf32>
    %64 = arith.divf %62, %63 : vector<8x1xf32>
    %cst_26 = arith.constant 9.99999974E-6 : f32
    %65 = vector.broadcast %cst_26 : f32 to vector<8x1xf32>
    %66 = arith.addf %64, %65 : vector<8x1xf32>
    %67 = math.rsqrt %66 : vector<8x1xf32>
    %68 = vector.broadcast %67 : vector<8x1xf32> to vector<8x128xf32>
    %69 = arith.mulf %59, %68 : vector<8x128xf32>
    %70 = vector.broadcast %3 : vector<1x128xf32> to vector<8x128xf32>
    %71 = arith.mulf %69, %70 : vector<8x128xf32>
    %72 = vector.broadcast %4 : vector<1x128xf32> to vector<8x128xf32>
    %73 = arith.addf %71, %72 : vector<8x128xf32>
    %c0_27 = arith.constant 0 : index
    %c256 = arith.constant 256 : index
    %74 = vector.load %arg6[%c0_27, %c256] : memref<8x512xf32, #tpu.memory_space<vmem>>, vector<8x128xf32>
    tpu.vector_store %arg6[%c0_27, %c256], %73 {strides = array<i32>} : memref<8x512xf32, #tpu.memory_space<vmem>>, vector<8x128xf32>,
    %75 = vector.extract_strided_slice %8 {offsets = [0, 384], sizes = [8, 128], strides = [1, 1]} : vector<8x512xf32> to vector<8x128xf32>
    %cst_28 = arith.constant dense<0.000000e+00> : vector<8xf32>
    %76 = vector.multi_reduction <add>, %75, %cst_28 [1] : vector<8x128xf32> to vector<8xf32>
    %77 = vector.shape_cast %76 : vector<8xf32> to vector<8x1xf32>
    %cst_29 = arith.constant 1.280000e+02 : f32
    %78 = vector.broadcast %cst_29 : f32 to vector<8x1xf32>
    %79 = arith.divf %77, %78 : vector<8x1xf32>
    %80 = vector.broadcast %79 : vector<8x1xf32> to vector<8x128xf32>
    %81 = arith.subf %75, %80 : vector<8x128xf32>
    %82 = arith.mulf %81, %81 : vector<8x128xf32>
    %cst_30 = arith.constant dense<0.000000e+00> : vector<8xf32>
    %83 = vector.multi_reduction <add>, %82, %cst_30 [1] : vector<8x128xf32> to vector<8xf32>
    %84 = vector.shape_cast %83 : vector<8xf32> to vector<8x1xf32>
    %cst_31 = arith.constant 1.280000e+02 : f32
    %85 = vector.broadcast %cst_31 : f32 to vector<8x1xf32>
    %86 = arith.divf %84, %85 : vector<8x1xf32>
    %cst_32 = arith.constant 9.99999974E-6 : f32
    %87 = vector.broadcast %cst_32 : f32 to vector<8x1xf32>
    %88 = arith.addf %86, %87 : vector<8x1xf32>
    %89 = math.rsqrt %88 : vector<8x1xf32>
    %90 = vector.broadcast %89 : vector<8x1xf32> to vector<8x128xf32>
    %91 = arith.mulf %81, %90 : vector<8x128xf32>
    %92 = vector.broadcast %3 : vector<1x128xf32> to vector<8x128xf32>
    %93 = arith.mulf %91, %92 : vector<8x128xf32>
    %94 = vector.broadcast %4 : vector<1x128xf32> to vector<8x128xf32>
    %95 = arith.addf %93, %94 : vector<8x128xf32>
    %c0_33 = arith.constant 0 : index
    %c384 = arith.constant 384 : index
    %96 = vector.load %arg6[%c0_33, %c384] : memref<8x512xf32, #tpu.memory_space<vmem>>, vector<8x128xf32>
    tpu.vector_store %arg6[%c0_33, %c384], %95 {strides = array<i32>} : memref<8x512xf32, #tpu.memory_space<vmem>>, vector<8x128xf32>,
    return
  }
  func.func @transform_0(%arg0: i32) -> (i32, i32) {
    %c0_i32 = arith.constant 0 : i32
    %c0_i32_0 = arith.constant 0 : i32
    return %arg0, %c0_i32 : i32, i32
  }
  func.func @transform_1(%arg0: i32) -> (i32, i32) {
    %c0_i32 = arith.constant 0 : i32
    %c0_i32_0 = arith.constant 0 : i32
    %c0_i32_1 = arith.constant 0 : i32
    return %c0_i32, %c0_i32_0 : i32, i32
  }
  func.func @transform_2(%arg0: i32) -> (i32, i32) {
    %c0_i32 = arith.constant 0 : i32
    %c0_i32_0 = arith.constant 0 : i32
    %c0_i32_1 = arith.constant 0 : i32
    return %c0_i32, %c0_i32_0 : i32, i32
  }
  func.func @transform_3(%arg0: i32) -> (i32, i32) {
    %c0_i32 = arith.constant 0 : i32
    %c0_i32_0 = arith.constant 0 : i32
    %c0_i32_1 = arith.constant 0 : i32
    return %c0_i32, %c0_i32_0 : i32, i32
  }
  func.func @transform_4(%arg0: i32) -> (i32, i32) {
    %c0_i32 = arith.constant 0 : i32
    %c0_i32_0 = arith.constant 0 : i32
    %c0_i32_1 = arith.constant 0 : i32
    return %c0_i32, %c0_i32_0 : i32, i32
  }
  func.func @transform_5(%arg0: i32) -> (i32, i32) {
    %c0_i32 = arith.constant 0 : i32
    %c0_i32_0 = arith.constant 0 : i32
    return %arg0, %c0_i32 : i32, i32
  }
}

</mosaic_0001>

<llo_original>
// kernel: tpu_custom_call.1
$region0: #{tpu_custom_call.1}
  #allocation0 [shape = 'u32[]', space=smem, size = 0x4, offset = 0x4, fixed_abs, tag = 'smem constant byte address 0x4 - core index']
  #allocation1 [shape = 'u32[144,128]{1,0:T(1,128)}', space=vmem, size = 0x12000, scoped, tag = 'internal scratch']
  %s0 = inlined_call_operand.hbm [shape: f32[8,128], index: 0, kind: input, shape index: {}]
  %s1 = inlined_call_operand.hbm [shape: bf16[128,512], index: 1, kind: input, shape index: {}]
  %s2 = inlined_call_operand.hbm [shape: f32[1,512], index: 2, kind: input, shape index: {}]
  %s3 = inlined_call_operand.vmem [shape: f32[1,128], index: 3, kind: input, shape index: {}]
  %s4 = inlined_call_operand.vmem [shape: f32[1,128], index: 4, kind: input, shape index: {}]
  %s5 = inlined_call_operand.hbm [shape: f32[8,512], index: 5, kind: output, shape index: {}]
  %s6 = sld [smem:[#allocation0]]
  $region42: #{tpu_custom_call.1} parent=0
    _
  %s8 = ssub.s32 1, %s6
  %s9 = scalar_select 0, %s8, %s6
  $region1: #{tpu_custom_call.1} parent=0
    #allocation2 [shape = 'u8[4096]{0}', space=vmem, size = 0x1000, scoped, tag = 'input window, operand 0, single buffered']
    #allocation3 [shape = 's32[1]{0}', space=sflag, size = 0x4, scoped, tag = 'scoped memory for tpu_custom_call.1']
    #allocation4 [shape = 's32[1]{0}', space=sflag, size = 0x4, scoped, tag = 'scoped memory for tpu_custom_call.1']
    #allocation5 [shape = 'u8[131072]{0}', space=vmem, size = 0x20000, scoped, tag = 'input window, operand 1, single buffered']
    #allocation6 [shape = 's32[1]{0}', space=sflag, size = 0x4, scoped, tag = 'scoped memory for tpu_custom_call.1']
    #allocation7 [shape = 'u8[2048]{0}', space=vmem, size = 0x800, scoped, tag = 'input window, operand 2, single buffered']
    #allocation8 [shape = 'u8[16384]{0}', space=vmem, size = 0x4000, scoped, tag = 'output window, operand 0, single buffered']
    %10 = vsyncpa [#allocation3], 0
    %11 = vsyncpa [#allocation6], 0
    %12 = vsyncpa [#allocation4], 0
    // Predicated region
    $region2: #{tpu_custom_call.1} parent=1 // pred_check
      _
    $region3: #{tpu_custom_call.1} parent=1 // pred_check_branch
      %14 = sbr.rel (0) target = $region5
    $region4: #{tpu_custom_call.1} parent=1 // pred_region
      %s16 = ssub.s32 128, 128
      %17 = vsyncadd [#allocation3], %s16
      %s19 = sshll.u32 [#allocation2], 4
      %s20 = int_to_ptr.vmem [resolvable:$true] %s19
      %22 = dma.hbm_to_vmem [thread:$0]  %s0, 128, %s20, [#allocation3]
    $region5: #{tpu_custom_call.1} parent=1 // pred_fallthru
      _
    // Predicated region
    $region6: #{tpu_custom_call.1} parent=1 // pred_check
      _
    $region7: #{tpu_custom_call.1} parent=1 // pred_check_branch
      %24 = sbr.rel (0) target = $region9
    $region8: #{tpu_custom_call.1} parent=1 // pred_region
      %s26 = ssub.s32 4096, 4096
      %27 = vsyncadd [#allocation6], %s26
      %s28 = sshll.u32 [#allocation5], 4
      %s29 = int_to_ptr.vmem [resolvable:$true] %s28
      %34 = dma.hbm_to_vmem [thread:$0]  %s1, 4096, %s29, [#allocation6], 256, 256, 16
    $region9: #{tpu_custom_call.1} parent=1 // pred_fallthru
      _
    // Predicated region
    $region10: #{tpu_custom_call.1} parent=1 // pred_check
      _
    $region11: #{tpu_custom_call.1} parent=1 // pred_check_branch
      %36 = sbr.rel (0) target = $region13
    $region12: #{tpu_custom_call.1} parent=1 // pred_region
      %s38 = ssub.s32 64, 64
      %39 = vsyncadd [#allocation6], %s38
      %s41 = sshll.u32 [#allocation7], 4
      %s42 = int_to_ptr.vmem [resolvable:$true] %s41
      %44 = dma.hbm_to_vmem [thread:$0]  %s2, 64, %s42, [#allocation6]
    $region13: #{tpu_custom_call.1} parent=1 // pred_fallthru
      _
    // Predicated region
    $region14: #{tpu_custom_call.1} parent=1 // pred_check
      _
    $region15: #{tpu_custom_call.1} parent=1 // pred_check_branch
      %46 = sbr.rel (0) target = $region17
    $region16: #{tpu_custom_call.1} parent=1 // pred_region
      _
    $region17: #{tpu_custom_call.1} parent=1 // pred_fallthru
      _
    // Predicated region
    $region18: #{tpu_custom_call.1} parent=1 // pred_check
      _
    $region19: #{tpu_custom_call.1} parent=1 // pred_check_branch
      %48 = sbr.rel (0) target = $region21
    $region20: #{tpu_custom_call.1} parent=1 // pred_region
      _
    $region21: #{tpu_custom_call.1} parent=1 // pred_fallthru
      _
    // Predicated region
    $region22: #{tpu_custom_call.1} parent=1 // pred_check
      _
    $region23: #{tpu_custom_call.1} parent=1 // pred_check_branch
      %50 = sbr.rel (0) target = $region25
    $region24: #{tpu_custom_call.1} parent=1 // pred_region
      %51 = dma.done [#allocation3], 128
    $region25: #{tpu_custom_call.1} parent=1 // pred_fallthru
      _
    // Predicated region
    $region26: #{tpu_custom_call.1} parent=1 // pred_check
      _
    $region27: #{tpu_custom_call.1} parent=1 // pred_check_branch
      %53 = sbr.rel (0) target = $region29
    $region28: #{tpu_custom_call.1} parent=1 // pred_region
      %54 = dma.done [#allocation6], 4096
    $region29: #{tpu_custom_call.1} parent=1 // pred_fallthru
      _
    // Predicated region
    $region30: #{tpu_custom_call.1} parent=1 // pred_check
      _
    $region31: #{tpu_custom_call.1} parent=1 // pred_check_branch
      %56 = sbr.rel (0) target = $region33
    $region32: #{tpu_custom_call.1} parent=1 // pred_region
      %57 = dma.done [#allocation6], 64
    $region33: #{tpu_custom_call.1} parent=1 // pred_fallthru
      _
    %v58 = vld [vmem:[#allocation2] sm:$0xff]
    %v59 = vld [vmem:[#allocation5] sm:$0xff]
    %v60 = vld [vmem:[#allocation5 + $0x8] sm:$0xff]
    %v61 = vld [vmem:[#allocation5 + $0x10] sm:$0xff]
    %v62 = vld [vmem:[#allocation5 + $0x18] sm:$0xff]
    %v63 = vld [vmem:[#allocation5 + $0x20] sm:$0xff]
    %v64 = vld [vmem:[#allocation5 + $0x28] sm:$0xff]
    %v65 = vld [vmem:[#allocation5 + $0x30] sm:$0xff]
    %v66 = vld [vmem:[#allocation5 + $0x38] sm:$0xff]
    %v67 = vld [vmem:[#allocation5 + $0x40] sm:$0xff]
    %v68 = vld [vmem:[#allocation5 + $0x48] sm:$0xff]
    %v69 = vld [vmem:[#allocation5 + $0x50] sm:$0xff]
    %v70 = vld [vmem:[#allocation5 + $0x58] sm:$0xff]
    %v71 = vld [vmem:[#allocation5 + $0x60] sm:$0xff]
    %v72 = vld [vmem:[#allocation5 + $0x68] sm:$0xff]
    %v73 = vld [vmem:[#allocation5 + $0x70] sm:$0xff]
    %v74 = vld [vmem:[#allocation5 + $0x78] sm:$0xff]
    %v75 = vld [vmem:[#allocation5 + $0x80] sm:$0xff]
    %v76 = vld [vmem:[#allocation5 + $0x88] sm:$0xff]
    %v77 = vld [vmem:[#allocation5 + $0x90] sm:$0xff]
    %v78 = vld [vmem:[#allocation5 + $0x98] sm:$0xff]
    %v79 = vld [vmem:[#allocation5 + $0xa0] sm:$0xff]
    %v80 = vld [vmem:[#allocation5 + $0xa8] sm:$0xff]
    %v81 = vld [vmem:[#allocation5 + $0xb0] sm:$0xff]
    %v82 = vld [vmem:[#allocation5 + $0xb8] sm:$0xff]
    %v83 = vld [vmem:[#allocation5 + $0xc0] sm:$0xff]
    %v84 = vld [vmem:[#allocation5 + $0xc8] sm:$0xff]
    %v85 = vld [vmem:[#allocation5 + $0xd0] sm:$0xff]
    %v86 = vld [vmem:[#allocation5 + $0xd8] sm:$0xff]
    %v87 = vld [vmem:[#allocation5 + $0xe0] sm:$0xff]
    %v88 = vld [vmem:[#allocation5 + $0xe8] sm:$0xff]
    %v89 = vld [vmem:[#allocation5 + $0xf0] sm:$0xff]
    %v90 = vld [vmem:[#allocation5 + $0xf8] sm:$0xff]
    %v91 = vunpack.c.l.bf16 %v59
    %v92 = vunpack.c.h.bf16 %v59
    %v93 = vunpack.c.l.bf16 %v60
    %v94 = vunpack.c.h.bf16 %v60
    %v95 = vunpack.c.l.bf16 %v61
    %v96 = vunpack.c.h.bf16 %v61
    %v97 = vunpack.c.l.bf16 %v62
    %v98 = vunpack.c.h.bf16 %v62
    %v99 = vunpack.c.l.bf16 %v63
    %v100 = vunpack.c.h.bf16 %v63
    %v101 = vunpack.c.l.bf16 %v64
    %v102 = vunpack.c.h.bf16 %v64
    %v103 = vunpack.c.l.bf16 %v65
    %v104 = vunpack.c.h.bf16 %v65
    %v105 = vunpack.c.l.bf16 %v66
    %v106 = vunpack.c.h.bf16 %v66
    %v107 = vunpack.c.l.bf16 %v67
    %v108 = vunpack.c.h.bf16 %v67
    %v109 = vunpack.c.l.bf16 %v68
    %v110 = vunpack.c.h.bf16 %v68
    %v111 = vunpack.c.l.bf16 %v69
    %v112 = vunpack.c.h.bf16 %v69
    %v113 = vunpack.c.l.bf16 %v70
    %v114 = vunpack.c.h.bf16 %v70
    %v115 = vunpack.c.l.bf16 %v71
    %v116 = vunpack.c.h.bf16 %v71
    %v117 = vunpack.c.l.bf16 %v72
    %v118 = vunpack.c.h.bf16 %v72
    %v119 = vunpack.c.l.bf16 %v73
    %v120 = vunpack.c.h.bf16 %v73
    %v121 = vunpack.c.l.bf16 %v74
    %v122 = vunpack.c.h.bf16 %v74
    %v123 = vunpack.c.l.bf16 %v75
    %v124 = vunpack.c.h.bf16 %v75
    %v125 = vunpack.c.l.bf16 %v76
    %v126 = vunpack.c.h.bf16 %v76
    %v127 = vunpack.c.l.bf16 %v77
    %v128 = vunpack.c.h.bf16 %v77
    %v129 = vunpack.c.l.bf16 %v78
    %v130 = vunpack.c.h.bf16 %v78
    %v131 = vunpack.c.l.bf16 %v79
    %v132 = vunpack.c.h.bf16 %v79
    %v133 = vunpack.c.l.bf16 %v80
    %v134 = vunpack.c.h.bf16 %v80
    %v135 = vunpack.c.l.bf16 %v81
    %v136 = vunpack.c.h.bf16 %v81
    %v137 = vunpack.c.l.bf16 %v82
    %v138 = vunpack.c.h.bf16 %v82
    %v139 = vunpack.c.l.bf16 %v83
    %v140 = vunpack.c.h.bf16 %v83
    %v141 = vunpack.c.l.bf16 %v84
    %v142 = vunpack.c.h.bf16 %v84
    %v143 = vunpack.c.l.bf16 %v85
    %v144 = vunpack.c.h.bf16 %v85
    %v145 = vunpack.c.l.bf16 %v86
    %v146 = vunpack.c.h.bf16 %v86
    %v147 = vunpack.c.l.bf16 %v87
    %v148 = vunpack.c.h.bf16 %v87
    %v149 = vunpack.c.l.bf16 %v88
    %v150 = vunpack.c.h.bf16 %v88
    %v151 = vunpack.c.l.bf16 %v89
    %v152 = vunpack.c.h.bf16 %v89
    %v153 = vunpack.c.l.bf16 %v90
    %v154 = vunpack.c.h.bf16 %v90
    %v155 = vld [vmem:[%s3] sm:$0x1]
    %v156 = vld [vmem:[%s4] sm:$0x1]
    %v157 = vld [vmem:[#allocation7] sm:$0xf]
    %v159 = vlaneseq
    %v160 = vshrl.u32 %v159, 7
    %v161 = vsub.s32 0, %v160
    %v162 = vrot.slane %v157, %v161
    %v163 = vlaneseq
    %v164 = vshrl.u32 %v163, 7
    %v165 = vsub.s32 1, %v164
    %v166 = vrot.slane %v157, %v165
    %v167 = vlaneseq
    %v168 = vshrl.u32 %v167, 7
    %v169 = vsub.s32 2, %v168
    %v170 = vrot.slane %v157, %v169
    %v171 = vlaneseq
    %v172 = vshrl.u32 %v171, 7
    %v173 = vsub.s32 3, %v172
    %v174 = vrot.slane %v157, %v173
    %179 = vmatprep.subr.mxu0 %v152
    %180 = vmatpush1.msra.mxu0 %v151
    %181 = vmatprep.subr.mxu0 %v148
    %182 = vmatpush1.msra.mxu0 %v147
    %183 = vmatprep.subr.mxu0 %v144
    %184 = vmatpush1.msra.mxu0 %v143
    %185 = vmatprep.subr.mxu0 %v140
    %186 = vmatpush1.msra.mxu0 %v139
    %187 = vmatprep.subr.mxu0 %v136
    %188 = vmatpush1.msra.mxu0 %v135
    %189 = vmatprep.subr.mxu0 %v132
    %190 = vmatpush1.msra.mxu0 %v131
    %191 = vmatprep.subr.mxu0 %v128
    %192 = vmatpush1.msra.mxu0 %v127
    %193 = vmatprep.subr.mxu0 %v124
    %194 = vmatpush1.msra.mxu0 %v123
    %195 = vmatprep.subr.mxu0 %v120
    %196 = vmatpush1.msra.mxu0 %v119
    %197 = vmatprep.subr.mxu0 %v116
    %198 = vmatpush1.msra.mxu0 %v115
    %199 = vmatprep.subr.mxu0 %v112
    %200 = vmatpush1.msra.mxu0 %v111
    %201 = vmatprep.subr.mxu0 %v108
    %202 = vmatpush1.msra.mxu0 %v107
    %203 = vmatprep.subr.mxu0 %v104
    %204 = vmatpush1.msra.mxu0 %v103
    %205 = vmatprep.subr.mxu0 %v100
    %206 = vmatpush1.msra.mxu0 %v99
    %207 = vmatprep.subr.mxu0 %v96
    %208 = vmatpush1.msra.mxu0 %v95
    %209 = vmatprep.subr.mxu0 %v92
    %210 = vmatpush1.msra.mxu0 %v91
    %211 = vmatprep.subr.mxu0 0.0
    %212 = vmatpush2.msra.mxu0 0.0
    %213 = vmatprep.subr.mxu0 0.0
    %214 = vmatpush2.msra.mxu0 0.0
    %215 = vmatprep.subr.mxu0 0.0
    %216 = vmatpush2.msra.mxu0 0.0
    %217 = vmatprep.subr.mxu0 0.0
    %218 = vmatpush2.msra.mxu0 0.0
    %219 = vmatprep.subr.mxu0 0.0
    %220 = vmatpush2.msra.mxu0 0.0
    %221 = vmatprep.subr.mxu0 0.0
    %222 = vmatpush2.msra.mxu0 0.0
    %223 = vmatprep.subr.mxu0 0.0
    %224 = vmatpush2.msra.mxu0 0.0
    %225 = vmatprep.subr.mxu0 0.0
    %226 = vmatpush2.msra.mxu0 0.0
    %227 = vmatprep.subr.mxu0 0.0
    %228 = vmatpush2.msra.mxu0 0.0
    %229 = vmatprep.subr.mxu0 0.0
    %230 = vmatpush2.msra.mxu0 0.0
    %231 = vmatprep.subr.mxu0 0.0
    %232 = vmatpush2.msra.mxu0 0.0
    %233 = vmatprep.subr.mxu0 0.0
    %234 = vmatpush2.msra.mxu0 0.0
    %235 = vmatprep.subr.mxu0 0.0
    %236 = vmatpush2.msra.mxu0 0.0
    %237 = vmatprep.subr.mxu0 0.0
    %238 = vmatpush2.msra.mxu0 0.0
    %239 = vmatprep.subr.mxu0 0.0
    %240 = vmatpush2.msra.mxu0 0.0
    %241 = vmatprep.subr.mxu0 0.0
    %242 = vmatpush2.msra.mxu0 0.0
    %243 = vmatprep.mubr.f32.mxu0 0.0
    %244 = vmatmul.mubr.f32.gmra.mxu0 %v58
    %v245 = vpop.f32.mrf.mxu0
    %v246 = vadd.f32 %v162, %v245
    %v247 = vpop.f32.mrf.mxu0
    %v248 = vadd.f32 %v166, %v247
    %249 = vdwg.mxu0
    %250 = vmatprep.subr.mxu0 %v154
    %251 = vmatpush1.msra.mxu0 %v153
    %252 = vmatprep.subr.mxu0 %v150
    %253 = vmatpush1.msra.mxu0 %v149
    %254 = vmatprep.subr.mxu0 %v146
    %255 = vmatpush1.msra.mxu0 %v145
    %256 = vmatprep.subr.mxu0 %v142
    %257 = vmatpush1.msra.mxu0 %v141
    %258 = vmatprep.subr.mxu0 %v138
    %259 = vmatpush1.msra.mxu0 %v137
    %260 = vmatprep.subr.mxu0 %v134
    %261 = vmatpush1.msra.mxu0 %v133
    %262 = vmatprep.subr.mxu0 %v130
    %263 = vmatpush1.msra.mxu0 %v129
    %264 = vmatprep.subr.mxu0 %v126
    %265 = vmatpush1.msra.mxu0 %v125
    %266 = vmatprep.subr.mxu0 %v122
    %267 = vmatpush1.msra.mxu0 %v121
    %268 = vmatprep.subr.mxu0 %v118
    %269 = vmatpush1.msra.mxu0 %v117
    %270 = vmatprep.subr.mxu0 %v114
    %271 = vmatpush1.msra.mxu0 %v113
    %272 = vmatprep.subr.mxu0 %v110
    %273 = vmatpush1.msra.mxu0 %v109
    %274 = vmatprep.subr.mxu0 %v106
    %275 = vmatpush1.msra.mxu0 %v105
    %276 = vmatprep.subr.mxu0 %v102
    %277 = vmatpush1.msra.mxu0 %v101
    %278 = vmatprep.subr.mxu0 %v98
    %279 = vmatpush1.msra.mxu0 %v97
    %280 = vmatprep.subr.mxu0 %v94
    %281 = vmatpush1.msra.mxu0 %v93
    %282 = vmatprep.subr.mxu0 0.0
    %283 = vmatpush2.msra.mxu0 0.0
    %284 = vmatprep.subr.mxu0 0.0
    %285 = vmatpush2.msra.mxu0 0.0
    %286 = vmatprep.subr.mxu0 0.0
    %287 = vmatpush2.msra.mxu0 0.0
    %288 = vmatprep.subr.mxu0 0.0
    %289 = vmatpush2.msra.mxu0 0.0
    %290 = vmatprep.subr.mxu0 0.0
    %291 = vmatpush2.msra.mxu0 0.0
    %292 = vmatprep.subr.mxu0 0.0
    %293 = vmatpush2.msra.mxu0 0.0
    %294 = vmatprep.subr.mxu0 0.0
    %295 = vmatpush2.msra.mxu0 0.0
    %296 = vmatprep.subr.mxu0 0.0
    %297 = vmatpush2.msra.mxu0 0.0
    %298 = vmatprep.subr.mxu0 0.0
    %299 = vmatpush2.msra.mxu0 0.0
    %300 = vmatprep.subr.mxu0 0.0
    %301 = vmatpush2.msra.mxu0 0.0
    %302 = vmatprep.subr.mxu0 0.0
    %303 = vmatpush2.msra.mxu0 0.0
    %304 = vmatprep.subr.mxu0 0.0
    %305 = vmatpush2.msra.mxu0 0.0
    %306 = vmatprep.subr.mxu0 0.0
    %307 = vmatpush2.msra.mxu0 0.0
    %308 = vmatprep.subr.mxu0 0.0
    %309 = vmatpush2.msra.mxu0 0.0
    %310 = vmatprep.subr.mxu0 0.0
    %311 = vmatpush2.msra.mxu0 0.0
    %312 = vmatprep.subr.mxu0 0.0
    %313 = vmatpush2.msra.mxu0 0.0
    %314 = vmatprep.mubr.f32.mxu0 0.0
    %315 = vmatmul.mubr.f32.gmra.mxu0 %v58
    %v316 = vpop.f32.mrf.mxu0
    %v317 = vadd.f32 %v170, %v316
    %v318 = vpop.f32.mrf.mxu0
    %v319 = vadd.f32 %v174, %v318
    %320 = vdwg.mxu0
    %321 = vadd.xlane.f32.xlu0 %v246
    %v322 = vpop.xlane.xlu0 %321
    %v323 = vrcp.pop 128.0
    %v324 = vmul.f32 %v322, %v323
    %v325 = vsub.f32 %v246, %v324
    %v326 = vmul.f32 %v325, %v325
    %327 = vadd.xlane.f32.xlu0 %v326
    %v328 = vpop.xlane.xlu0 %327
    %v329 = vmul.f32 %v328, %v323
    %v330 = vadd.f32 %v329, 1e-05
    %v331 = vrsqrt.pop %v330
    %v332 = vmul.f32 %v325, %v331
    %v334 = vlaneseq
    %v335 = vshrl.u32 %v334, 7
    %v336 = vsub.s32 0, %v335
    %v337 = vrot.slane %v155, %v336
    %v339 = vmul.f32 %v332, %v337
    %v341 = vlaneseq
    %v342 = vshrl.u32 %v341, 7
    %v343 = vsub.s32 0, %v342
    %v344 = vrot.slane %v156, %v343
    %v346 = vadd.f32 %v339, %v344
    %347 = vst [vmem:[#allocation8] sm:$0xff] %v346
    %348 = vadd.xlane.f32.xlu0 %v248
    %v349 = vpop.xlane.xlu0 %348
    %v350 = vmul.f32 %v349, %v323
    %v351 = vsub.f32 %v248, %v350
    %v352 = vmul.f32 %v351, %v351
    %353 = vadd.xlane.f32.xlu0 %v352
    %v354 = vpop.xlane.xlu0 %353
    %v355 = vmul.f32 %v354, %v323
    %v356 = vadd.f32 %v355, 1e-05
    %v357 = vrsqrt.pop %v356
    %v358 = vmul.f32 %v351, %v357
    %v359 = vmul.f32 %v358, %v337
    %v360 = vadd.f32 %v359, %v344
    %361 = vst [vmem:[#allocation8 + $0x8] sm:$0xff] %v360
    %362 = vadd.xlane.f32.xlu0 %v317
    %v363 = vpop.xlane.xlu0 %362
    %v364 = vmul.f32 %v363, %v323
    %v365 = vsub.f32 %v317, %v364
    %v366 = vmul.f32 %v365, %v365
    %367 = vadd.xlane.f32.xlu0 %v366
    %v368 = vpop.xlane.xlu0 %367
    %v369 = vmul.f32 %v368, %v323
    %v370 = vadd.f32 %v369, 1e-05
    %v371 = vrsqrt.pop %v370
    %v372 = vmul.f32 %v365, %v371
    %v373 = vmul.f32 %v372, %v337
    %v374 = vadd.f32 %v373, %v344
    %375 = vst [vmem:[#allocation8 + $0x10] sm:$0xff] %v374
    %376 = vadd.xlane.f32.xlu0 %v319
    %v377 = vpop.xlane.xlu0 %376
    %v378 = vmul.f32 %v377, %v323
    %v379 = vsub.f32 %v319, %v378
    %v380 = vmul.f32 %v379, %v379
    %381 = vadd.xlane.f32.xlu0 %v380
    %v382 = vpop.xlane.xlu0 %381
    %v383 = vmul.f32 %v382, %v323
    %v384 = vadd.f32 %v383, 1e-05
    %v385 = vrsqrt.pop %v384
    %v386 = vmul.f32 %v379, %v385
    %v387 = vmul.f32 %v386, %v337
    %v388 = vadd.f32 %v387, %v344
    %389 = vst [vmem:[#allocation8 + $0x18] sm:$0xff] %v388
    // Predicated region
    $region34: #{tpu_custom_call.1} parent=1 // pred_check
      _
    $region35: #{tpu_custom_call.1} parent=1 // pred_check_branch
      %391 = sbr.rel (0) target = $region37
    $region36: #{tpu_custom_call.1} parent=1 // pred_region
      %s393 = ssub.s32 512, 512
      %394 = vsyncadd [#allocation4], %s393
      %s396 = sshll.u32 [#allocation8], 4
      %s397 = int_to_ptr.vmem [resolvable:$true] %s396
      %399 = dma.vmem_to_hbm [thread:$0]  %s397, 512, %s5, [#allocation4]
    $region37: #{tpu_custom_call.1} parent=1 // pred_fallthru
      _
    // Predicated region
    $region38: #{tpu_custom_call.1} parent=1 // pred_check
      _
    $region39: #{tpu_custom_call.1} parent=1 // pred_check_branch
      %401 = sbr.rel (0) target = $region41
    $region40: #{tpu_custom_call.1} parent=1 // pred_region
      %402 = dma.done [#allocation4], 512
    $region41: #{tpu_custom_call.1} parent=1 // pred_fallthru
      _
    %403 = vsyncpa [#allocation3], 1
    %404 = vsyncpa [#allocation6], 1
    %405 = vsyncpa [#allocation4], 1

</llo_original>
